<compile_context>
chip_gen: v7x
topology: tpu7x:2x2x1
jax: 0.10.0
libtpu: 0.0.40
codegen_flags: <defaults>
</compile_context>

<pallas_src>
import numpy as np
import jax
import jax.numpy as jnp
from jax import lax
from jax.experimental import pallas as pl
from jax.experimental.pallas import tpu as pltpu


N_HIDDEN = 512  # width of the critic's hidden layer (fixed by the module)


def _round_up(x, m):
    return ((x + m - 1) // m) * m


def _vmem_limit_bytes():
    """Per-chip scoped-VMEM limit: ~3/4 of physical, capped at 96 MiB."""
    try:
        phys = int(pltpu.get_tpu_info().vmem_capacity_bytes)
    except Exception:
        phys = 64 << 20  # conservative fallback (v7x per-core VMEM)
    return min(phys * 3 // 4, 96 << 20)


def _pick_tile(B, H, max_block_rows, vmem_limit):
    """Largest 128-multiple row tile that fits the VMEM budget (and <= cap)."""
    # Residents (w1, b1, w2) — assume default double-buffering -> x2.
    resident = 2 * 4 * (H * N_HIDDEN + 2 * N_HIDDEN)
    # Per streamed row: x tile (f32, double-buffered) + [*,512] hidden temp
    # + double-buffered output column.
    per_row = 4 * (2 * H + N_HIDDEN + 2)
    avail = int(vmem_limit * 0.8) - resident
    if avail > per_row * 128:
        cap = max(128, (avail // per_row) // 128 * 128)
    else:
        cap = 128
    cap = min(cap, _round_up(max(max_block_rows, 128), 128))
    tb = min(_round_up(B, 128), cap)
    # v7x megacore: make the grid >= 2 steps so "parallel" can use both TCs.
    if B >= 256:
        tb = min(tb, max(128, _round_up((B + 1) // 2, 128)))
    return tb


def _make_critic_kernel(tb, n_chunks, use_bf16):
    chunk = tb // n_chunks  # multiple of 128 by construction

    def kernel(x_ref, w1_ref, b1_ref, w2_ref, b2_ref, o_ref):
        # x: [tb, H], w1: [H, 512], b1: [1, 512], w2: [1, 512] (PyTorch row
        # layout of Linear(512,1)), b2: [1] in SMEM, o: [1, tb] (lane-dense).
        w1 = w1_ref[...]
        b1 = b1_ref[...]
        w2 = w2_ref[...]
        b2 = b2_ref[0]
        if use_bf16:
            w1 = w1.astype(jnp.bfloat16)
            w2 = w2.astype(jnp.bfloat16)
        # Statically unrolled row sub-chunks in one basic block: the LLO
        # scheduler co-issues chunk i+1's MXU matmul with chunk i's EUP tanh
        # and layer-2 dot instead of three serialized loops.
        for c in range(n_chunks):
            rows = pl.ds(c * chunk, chunk)  # static, 128-aligned
            x_c = x_ref[rows, :]
            if use_bf16:
                x_c = x_c.astype(jnp.bfloat16)
            h = jnp.dot(x_c, w1, preferred_element_type=jnp.float32)
            h = h + b1
            if use_bf16:
                h = h.astype(jnp.bfloat16)  # bf16 EUP tanh on v6e/v7x
            h = jnp.tanh(h)                                      # [chunk, 512]
            # Layer 2 as a lane contraction: (h @ w2^T)^T -> [1, chunk]
            # (A@B^T pattern; avoids an N=1 matmul and keeps the store
            # lane-dense / unmasked).
            v = lax.dot_general(
                w2, h,
                dimension_numbers=(((1,), (1,)), ((), ())),
                preferred_element_type=jnp.float32)              # [1, chunk]
            o_ref[:, rows] = v + b2

    return kernel


def adv_agent_critic_forward(hidden_state, w1, b1, w2_row, b2, *,
                             max_block_rows=2048, use_bf16=False):
    """hidden_state: [B, H] float32 -> value [B, 1] float32.

    w1: [H, 512] (transposed PyTorch weight), b1: [1, 512],
    w2_row: [1, 512] (PyTorch weight layout of Linear(512, 1)), b2: [1].
    use_bf16: opt-in bf16 MXU/EUP fast path (looser numerics).
    """
    if isinstance(hidden_state, tuple):
        hidden_state = hidden_state[0]

    B, H = hidden_state.shape
    n_hid = w1.shape[1]

    vmem_limit = _vmem_limit_bytes()
    tb = _pick_tile(B, H, max_block_rows, vmem_limit)
    num_tiles = pl.cdiv(B, tb)
    b_pad = num_tiles * tb  # tail rows (if any) are garbage and sliced off

    # Largest sub-chunk count whose chunk stays a multiple of 128 lanes.
    n128 = tb // 128
    n_chunks = next(c for c in (4, 3, 2, 1) if n128 % c == 0)

    kernel = _make_critic_kernel(tb, n_chunks, use_bf16)

    cost = pl.CostEstimate(
        flops=2 * B * H * n_hid + 2 * B * n_hid,
        transcendentals=B * n_hid,
        bytes_accessed=4 * (B * H + H * n_hid + 2 * n_hid + B),
    )

    out = pl.pallas_call(
        kernel,
        grid=(num_tiles,),
        out_shape=jax.ShapeDtypeStruct((1, b_pad), jnp.float32),
        in_specs=[
            pl.BlockSpec((tb, H), lambda i: (i, 0)),           # streamed x tile
            pl.BlockSpec((H, n_hid), lambda i: (0, 0)),        # resident w1
            pl.BlockSpec((1, n_hid), lambda i: (0, 0)),        # resident b1
            pl.BlockSpec((1, n_hid), lambda i: (0, 0)),        # resident w2 row
            pl.BlockSpec(memory_space=pltpu.MemorySpace.SMEM),  # scalar b2
        ],
        out_specs=pl.BlockSpec((1, tb), lambda i: (0, i)),      # lane-dense store
        compiler_params=pltpu.CompilerParams(
            dimension_semantics=("parallel",),
            vmem_limit_bytes=vmem_limit),
        cost_estimate=cost,
    )(hidden_state, w1, b1, w2_row, b2)

    return out[0, :B].reshape(B, 1)


def orthogonal_init(key, rows, cols, gain):
    """Deterministic orthogonal init (same semantics as torch.nn.init.orthogonal_)."""
    n = max(rows, cols)
    a = np.asarray(jax.random.normal(key, (n, n), dtype=jnp.float32))
    q, r = np.linalg.qr(a)
    d = np.sign(np.diag(r))
    d[d == 0] = 1.0  # guard against exact-zero diagonal
    q = q * d[None, :]
    return jnp.asarray(gain * q[:rows, :cols], dtype=jnp.float32)


def make_params(key, hidden_size):
    k1, k2 = jax.random.split(key)
    # PyTorch Linear(H, 512): weight [512, H]; stored transposed -> [H, 512]
    w1_pt = orthogonal_init(k1, N_HIDDEN, hidden_size, gain=float(np.sqrt(2.0)))
    w1 = jnp.transpose(w1_pt)                                   # [H, 512]
    b1 = jnp.zeros((1, N_HIDDEN), dtype=jnp.float32)
    # PyTorch Linear(512, 1): weight [1, 512]; kept in that (row) layout
    w2_row = orthogonal_init(k2, 1, N_HIDDEN, gain=1.0)         # [1, 512]
    b2 = jnp.zeros((1,), dtype=jnp.float32)
    return w1, b1, w2_row, b2


if __name__ == "__main__":
    key = jax.random.PRNGKey(0)
    k_params, k_x1, k_x2, k_x3 = jax.random.split(key, 4)

    hidden_size = 32
    w1, b1, w2_row, b2 = make_params(k_params, hidden_size)

    def ref_fn(x):
        return jnp.tanh(x @ w1 + b1) @ w2_row.T + b2.reshape(1, 1)

    # 1) Small batch: single padded 128-row tile, lane-dense store.
    x_small = jax.random.normal(k_x1, (8, hidden_size), dtype=jnp.float32)
    v_small = jax.block_until_ready(
        adv_agent_critic_forward(x_small, w1, b1, w2_row, b2))
    assert v_small.shape == (8, 1)
    assert jnp.allclose(v_small, ref_fn(x_small), atol=1e-4, rtol=1e-4)

    # 2) Multi-tile grid with a padded final tile (forced 128-row tiles).
    x_mid = jax.random.normal(k_x2, (200, hidden_size), dtype=jnp.float32)
    v_mid = jax.block_until_ready(
        adv_agent_critic_forward(x_mid, w1, b1, w2_row, b2, max_block_rows=128))
    assert v_mid.shape == (200, 1)
    assert jnp.allclose(v_mid, ref_fn(x_mid), atol=1e-4, rtol=1e-4)

    # 3) Larger batch: 2-step grid (megacore-friendly) + 4-way chunked body.
    x_big = jax.random.normal(k_x3, (1000, hidden_size), dtype=jnp.float32)
    v_big = jax.block_until_ready(
        adv_agent_critic_forward(x_big, w1, b1, w2_row, b2))
    assert v_big.shape == (1000, 1)
    assert jnp.allclose(v_big, ref_fn(x_big), atol=1e-4, rtol=1e-4)

    # 4) Opt-in bf16 fast path (same structure, looser numerics).
    v_bf16 = jax.block_until_ready(
        adv_agent_critic_forward(x_big, w1, b1, w2_row, b2, use_bf16=True))
    assert v_bf16.shape == (1000, 1)
    assert jnp.allclose(v_bf16, ref_fn(x_big), atol=5e-2, rtol=5e-2)

    print("KERNEL_OK")
</pallas_src>

<mosaic_0001>
module attributes {stable_mosaic.version = 11 : i64} {
  func.func @kernel(%arg0: i32, %arg1: memref<128x32xf32, #tpu.memory_space<vmem>>, %arg2: memref<32x512xf32, #tpu.memory_space<vmem>>, %arg3: memref<1x512xf32, #tpu.memory_space<vmem>>, %arg4: memref<1x512xf32, #tpu.memory_space<vmem>>, %arg5: memref<1xf32, #tpu.memory_space<smem>>, %arg6: memref<1x128xf32, #tpu.memory_space<vmem>>) attributes {dimension_semantics = [#tpu.dimension_semantics<parallel>], iteration_bounds = array<i64: 1>, scalar_prefetch = 0 : i64, scratch_operands = 0 : i64, tpu.core_type = #tpu.core_type<tc>, window_params = [{transform_indices = @transform_0, window_bounds = array<i64: 128, 32>}, {pipeline_mode = #tpu.pipeline_mode<synchronous>, transform_indices = @transform_1, window_bounds = array<i64: 32, 512>}, {pipeline_mode = #tpu.pipeline_mode<synchronous>, transform_indices = @transform_2, window_bounds = array<i64: 1, 512>}, {pipeline_mode = #tpu.pipeline_mode<synchronous>, transform_indices = @transform_3, window_bounds = array<i64: 1, 512>}, {transform_indices = @transform_4, window_bounds = array<i64: 1>}, {transform_indices = @transform_5, window_bounds = array<i64: 1, 128>}]} {
    %c0 = arith.constant 0 : index
    %c0_0 = arith.constant 0 : index
    %0 = vector.load %arg2[%c0, %c0_0] : memref<32x512xf32, #tpu.memory_space<vmem>>, vector<32x512xf32>
    %c0_1 = arith.constant 0 : index
    %c0_2 = arith.constant 0 : index
    %1 = vector.load %arg3[%c0_1, %c0_2] : memref<1x512xf32, #tpu.memory_space<vmem>>, vector<1x512xf32>
    %c0_3 = arith.constant 0 : index
    %c0_4 = arith.constant 0 : index
    %2 = vector.load %arg4[%c0_3, %c0_4] : memref<1x512xf32, #tpu.memory_space<vmem>>, vector<1x512xf32>
    %c0_5 = arith.constant 0 : index
    %3 = memref.load %arg5[%c0_5] : memref<1xf32, #tpu.memory_space<smem>>
    %c0_6 = arith.constant 0 : index
    %c0_7 = arith.constant 0 : index
    %4 = vector.load %arg1[%c0_6, %c0_7] : memref<128x32xf32, #tpu.memory_space<vmem>>, vector<128x32xf32>
    %cst = arith.constant dense<0.000000e+00> : vector<128x512xf32>
    %5 = tpu.matmul %4, %0, %cst {dimension_numbers = #tpu.dot_dimension_numbers<[1], [0], [0], [1], [0, 0, 1, 1], [], []>} : vector<128x32xf32>, vector<32x512xf32>, vector<128x512xf32> -> vector<128x512xf32>
    %6 = vector.broadcast %1 : vector<1x512xf32> to vector<128x512xf32>
    %7 = arith.addf %5, %6 : vector<128x512xf32>
    %8 = math.tanh %7 : vector<128x512xf32>
    %cst_8 = arith.constant dense<0.000000e+00> : vector<1x128xf32>
    %9 = tpu.matmul %2, %8, %cst_8 {dimension_numbers = #tpu.dot_dimension_numbers<[1], [1], [0], [0], [0, 0, 1, 0], [], []>} : vector<1x512xf32>, vector<128x512xf32>, vector<1x128xf32> -> vector<1x128xf32>
    %10 = vector.broadcast %3 : f32 to vector<1x128xf32>
    %11 = arith.addf %9, %10 : vector<1x128xf32>
    %c0_9 = arith.constant 0 : index
    %c0_10 = arith.constant 0 : index
    %12 = vector.load %arg6[%c0_9, %c0_10] : memref<1x128xf32, #tpu.memory_space<vmem>>, vector<1x128xf32>
    tpu.vector_store %arg6[%c0_9, %c0_10], %11 {strides = array<i32>} : memref<1x128xf32, #tpu.memory_space<vmem>>, vector<1x128xf32>,
    return
  }
  func.func @transform_0(%arg0: i32) -> (i32, i32) {
    %c0_i32 = arith.constant 0 : i32
    %c0_i32_0 = arith.constant 0 : i32
    return %arg0, %c0_i32 : i32, i32
  }
  func.func @transform_1(%arg0: i32) -> (i32, i32) {
    %c0_i32 = arith.constant 0 : i32
    %c0_i32_0 = arith.constant 0 : i32
    %c0_i32_1 = arith.constant 0 : i32
    return %c0_i32, %c0_i32_0 : i32, i32
  }
  func.func @transform_2(%arg0: i32) -> (i32, i32) {
    %c0_i32 = arith.constant 0 : i32
    %c0_i32_0 = arith.constant 0 : i32
    %c0_i32_1 = arith.constant 0 : i32
    return %c0_i32, %c0_i32_0 : i32, i32
  }
  func.func @transform_3(%arg0: i32) -> (i32, i32) {
    %c0_i32 = arith.constant 0 : i32
    %c0_i32_0 = arith.constant 0 : i32
    %c0_i32_1 = arith.constant 0 : i32
    return %c0_i32, %c0_i32_0 : i32, i32
  }
  func.func @transform_4(%arg0: i32) -> i32 {
    %c0_i32 = arith.constant 0 : i32
    %c0_i32_0 = arith.constant 0 : i32
    return %c0_i32 : i32
  }
  func.func @transform_5(%arg0: i32) -> (i32, i32) {
    %c0_i32 = arith.constant 0 : i32
    %c0_i32_0 = arith.constant 0 : i32
    return %c0_i32, %arg0 : i32, i32
  }
}

</mosaic_0001>

<llo_original>
// kernel: tpu_custom_call.1
$region0: #{tpu_custom_call.1}
  #allocation0 [shape = 'u32[]', space=smem, size = 0x4, offset = 0x4, fixed_abs, tag = 'smem constant byte address 0x4 - core index']
  #allocation1 [shape = 'u32[144,128]{1,0:T(1,128)}', space=vmem, size = 0x12000, scoped, tag = 'internal scratch']
  #allocation2 [shape = 'f32[1]{0:T(128)S(6)}', space=smem, size = 0x200, scoped, tag = 'scoped memory for tpu_custom_call.1']
  %s0 = inlined_call_operand.hbm [shape: f32[8,32], index: 0, kind: input, shape index: {}]
  %s1 = inlined_call_operand.hbm [shape: f32[32,512], index: 1, kind: input, shape index: {}]
  %s2 = inlined_call_operand.vmem [shape: f32[1,512], index: 2, kind: input, shape index: {}]
  %s3 = inlined_call_operand.vmem [shape: f32[1,512], index: 3, kind: input, shape index: {}]
  %s4 = inlined_call_operand.<no memory space> [shape: f32[1], index: 4, kind: input, shape index: {}]
  %s5 = inlined_call_operand.hbm [shape: f32[1,128], index: 5, kind: output, shape index: {}]
  %s6 = sld [smem:[#allocation0]]
  $region38: #{tpu_custom_call.1} parent=0
    _
  %s8 = ssub.s32 1, %s6
  %s9 = scalar_select 0, %s8, %s6
  %10 = sst [smem:[#allocation2]] %s4
  $region1: #{tpu_custom_call.1} parent=0
    #allocation3 [shape = 'u8[65536]{0}', space=vmem, size = 0x10000, scoped, tag = 'input window, operand 0, single buffered']
    #allocation4 [shape = 's32[1]{0}', space=sflag, size = 0x4, scoped, tag = 'scoped memory for tpu_custom_call.1']
    #allocation5 [shape = 's32[1]{0}', space=sflag, size = 0x4, scoped, tag = 'scoped memory for tpu_custom_call.1']
    #allocation6 [shape = 'u8[65536]{0}', space=vmem, size = 0x10000, scoped, tag = 'input window, operand 1, single buffered']
    #allocation7 [shape = 's32[1]{0}', space=sflag, size = 0x4, scoped, tag = 'scoped memory for tpu_custom_call.1']
    #allocation8 [shape = 'u8[512]{0}', space=vmem, size = 0x400, scoped, tag = 'output window, operand 0, single buffered']
    %11 = vsyncpa [#allocation4], 0
    %12 = vsyncpa [#allocation7], 0
    %13 = vsyncpa [#allocation5], 0
    // Predicated region
    $region2: #{tpu_custom_call.1} parent=1 // pred_check
      _
    $region3: #{tpu_custom_call.1} parent=1 // pred_check_branch
      %15 = sbr.rel (0) target = $region5
    $region4: #{tpu_custom_call.1} parent=1 // pred_region
      %s17 = ssub.s32 2048, 128
      %18 = vsyncadd [#allocation4], %s17
      %s19 = sshll.u32 [#allocation3], 4
      %s20 = int_to_ptr.vmem [resolvable:$true] %s19
      %25 = dma.hbm_to_vmem [thread:$0]  %s0, 128, %s20, [#allocation4], 128, 128, 8
    $region5: #{tpu_custom_call.1} parent=1 // pred_fallthru
      _
    // Predicated region
    $region6: #{tpu_custom_call.1} parent=1 // pred_check
      _
    $region7: #{tpu_custom_call.1} parent=1 // pred_check_branch
      %27 = sbr.rel (0) target = $region9
    $region8: #{tpu_custom_call.1} parent=1 // pred_region
      %s29 = ssub.s32 2048, 2048
      %30 = vsyncadd [#allocation7], %s29
      %s31 = sshll.u32 [#allocation6], 4
      %s32 = int_to_ptr.vmem [resolvable:$true] %s31
      %37 = dma.hbm_to_vmem [thread:$0]  %s1, 2048, %s32, [#allocation7], 512, 512, 32
    $region9: #{tpu_custom_call.1} parent=1 // pred_fallthru
      _
    // Predicated region
    $region10: #{tpu_custom_call.1} parent=1 // pred_check
      _
    $region11: #{tpu_custom_call.1} parent=1 // pred_check_branch
      %39 = sbr.rel (0) target = $region13
    $region12: #{tpu_custom_call.1} parent=1 // pred_region
      _
    $region13: #{tpu_custom_call.1} parent=1 // pred_fallthru
      _
    // Predicated region
    $region14: #{tpu_custom_call.1} parent=1 // pred_check
      _
    $region15: #{tpu_custom_call.1} parent=1 // pred_check_branch
      %41 = sbr.rel (0) target = $region17
    $region16: #{tpu_custom_call.1} parent=1 // pred_region
      _
    $region17: #{tpu_custom_call.1} parent=1 // pred_fallthru
      _
    // Predicated region
    $region18: #{tpu_custom_call.1} parent=1 // pred_check
      _
    $region19: #{tpu_custom_call.1} parent=1 // pred_check_branch
      %43 = sbr.rel (0) target = $region21
    $region20: #{tpu_custom_call.1} parent=1 // pred_region
      _
    $region21: #{tpu_custom_call.1} parent=1 // pred_fallthru
      _
    // Predicated region
    $region22: #{tpu_custom_call.1} parent=1 // pred_check
      _
    $region23: #{tpu_custom_call.1} parent=1 // pred_check_branch
      %45 = sbr.rel (0) target = $region25
    $region24: #{tpu_custom_call.1} parent=1 // pred_region
      %46 = dma.done [#allocation4], 2048
    $region25: #{tpu_custom_call.1} parent=1 // pred_fallthru
      _
    // Predicated region
    $region26: #{tpu_custom_call.1} parent=1 // pred_check
      _
    $region27: #{tpu_custom_call.1} parent=1 // pred_check_branch
      %48 = sbr.rel (0) target = $region29
    $region28: #{tpu_custom_call.1} parent=1 // pred_region
      %49 = dma.done [#allocation7], 2048
    $region29: #{tpu_custom_call.1} parent=1 // pred_fallthru
      _
    %v50 = vld [vmem:[#allocation6] sm:$0xff]
    %v51 = vld [vmem:[#allocation6 + $0x8] sm:$0xff]
    %v52 = vld [vmem:[#allocation6 + $0x10] sm:$0xff]
    %v53 = vld [vmem:[#allocation6 + $0x18] sm:$0xff]
    %v54 = vld [vmem:[#allocation6 + $0x20] sm:$0xff]
    %v55 = vld [vmem:[#allocation6 + $0x28] sm:$0xff]
    %v56 = vld [vmem:[#allocation6 + $0x30] sm:$0xff]
    %v57 = vld [vmem:[#allocation6 + $0x38] sm:$0xff]
    %v58 = vld [vmem:[#allocation6 + $0x40] sm:$0xff]
    %v59 = vld [vmem:[#allocation6 + $0x48] sm:$0xff]
    %v60 = vld [vmem:[#allocation6 + $0x50] sm:$0xff]
    %v61 = vld [vmem:[#allocation6 + $0x58] sm:$0xff]
    %v62 = vld [vmem:[#allocation6 + $0x60] sm:$0xff]
    %v63 = vld [vmem:[#allocation6 + $0x68] sm:$0xff]
    %v64 = vld [vmem:[#allocation6 + $0x70] sm:$0xff]
    %v65 = vld [vmem:[#allocation6 + $0x78] sm:$0xff]
    %v66 = vld [vmem:[%s2] sm:$0xf]
    %v67 = vld [vmem:[%s3] sm:$0xf]
    %s68 = sld [smem:[#allocation2]]
    %v69 = vld [vmem:[#allocation3] sm:$0xff]
    %v70 = vld [vmem:[#allocation3 + $0x8] sm:$0xff]
    %v71 = vld [vmem:[#allocation3 + $0x10] sm:$0xff]
    %v72 = vld [vmem:[#allocation3 + $0x18] sm:$0xff]
    %v73 = vld [vmem:[#allocation3 + $0x20] sm:$0xff]
    %v74 = vld [vmem:[#allocation3 + $0x28] sm:$0xff]
    %v75 = vld [vmem:[#allocation3 + $0x30] sm:$0xff]
    %v76 = vld [vmem:[#allocation3 + $0x38] sm:$0xff]
    %v77 = vld [vmem:[#allocation3 + $0x40] sm:$0xff]
    %v78 = vld [vmem:[#allocation3 + $0x48] sm:$0xff]
    %v79 = vld [vmem:[#allocation3 + $0x50] sm:$0xff]
    %v80 = vld [vmem:[#allocation3 + $0x58] sm:$0xff]
    %v81 = vld [vmem:[#allocation3 + $0x60] sm:$0xff]
    %v82 = vld [vmem:[#allocation3 + $0x68] sm:$0xff]
    %v83 = vld [vmem:[#allocation3 + $0x70] sm:$0xff]
    %v84 = vld [vmem:[#allocation3 + $0x78] sm:$0xff]
    %v86 = vlaneseq
    %v87 = vshrl.u32 %v86, 7
    %v88 = vsub.s32 0, %v87
    %v89 = vrot.slane %v66, %v88
    %v90 = vlaneseq
    %v91 = vshrl.u32 %v90, 7
    %v92 = vsub.s32 1, %v91
    %v93 = vrot.slane %v66, %v92
    %v94 = vlaneseq
    %v95 = vshrl.u32 %v94, 7
    %v96 = vsub.s32 2, %v95
    %v97 = vrot.slane %v66, %v96
    %v98 = vlaneseq
    %v99 = vshrl.u32 %v98, 7
    %v100 = vsub.s32 3, %v99
    %v101 = vrot.slane %v66, %v100
    %vm106 = vcmask 261120
    %v108 = vsel %vm106, %v69, 0
    %v111 = vsel %vm106, %v70, 0
    %v114 = vsel %vm106, %v71, 0
    %v117 = vsel %vm106, %v72, 0
    %v120 = vsel %vm106, %v73, 0
    %v123 = vsel %vm106, %v74, 0
    %v126 = vsel %vm106, %v75, 0
    %v129 = vsel %vm106, %v76, 0
    %v132 = vsel %vm106, %v77, 0
    %v135 = vsel %vm106, %v78, 0
    %v138 = vsel %vm106, %v79, 0
    %v141 = vsel %vm106, %v80, 0
    %v144 = vsel %vm106, %v81, 0
    %v147 = vsel %vm106, %v82, 0
    %v150 = vsel %vm106, %v83, 0
    %v153 = vsel %vm106, %v84, 0
    %155 = vmatprep.subr.mxu0 %v51
    %156 = vmatpush1.msra.mxu0 %v50
    %157 = vmatprep.subr.mxu0 %v55
    %158 = vmatpush1.msra.mxu0 %v54
    %159 = vmatprep.subr.mxu0 %v59
    %160 = vmatpush1.msra.mxu0 %v58
    %161 = vmatprep.subr.mxu0 %v63
    %162 = vmatpush1.msra.mxu0 %v62
    %163 = vmatprep.subr.mxu0 0.0
    %164 = vmatpush1.msra.mxu0 0.0
    %165 = vmatprep.subr.mxu0 0.0
    %166 = vmatpush1.msra.mxu0 0.0
    %167 = vmatprep.subr.mxu0 0.0
    %168 = vmatpush1.msra.mxu0 0.0
    %169 = vmatprep.subr.mxu0 0.0
    %170 = vmatpush1.msra.mxu0 0.0
    %171 = vmatprep.subr.mxu0 0.0
    %172 = vmatpush1.msra.mxu0 0.0
    %173 = vmatprep.subr.mxu0 0.0
    %174 = vmatpush1.msra.mxu0 0.0
    %175 = vmatprep.subr.mxu0 0.0
    %176 = vmatpush1.msra.mxu0 0.0
    %177 = vmatprep.subr.mxu0 0.0
    %178 = vmatpush1.msra.mxu0 0.0
    %179 = vmatprep.subr.mxu0 0.0
    %180 = vmatpush1.msra.mxu0 0.0
    %181 = vmatprep.subr.mxu0 0.0
    %182 = vmatpush1.msra.mxu0 0.0
    %183 = vmatprep.subr.mxu0 0.0
    %184 = vmatpush1.msra.mxu0 0.0
    %185 = vmatprep.subr.mxu0 0.0
    %186 = vmatpush1.msra.mxu0 0.0
    %187 = vmatprep.subr.mxu0 0.0
    %188 = vmatpush1.msra.mxu0 0.0
    %189 = vmatprep.subr.mxu0 0.0
    %190 = vmatpush1.msra.mxu0 0.0
    %191 = vmatprep.subr.mxu0 0.0
    %192 = vmatpush1.msra.mxu0 0.0
    %193 = vmatprep.subr.mxu0 0.0
    %194 = vmatpush1.msra.mxu0 0.0
    %195 = vmatprep.subr.mxu0 0.0
    %196 = vmatpush1.msra.mxu0 0.0
    %197 = vmatprep.subr.mxu0 0.0
    %198 = vmatpush1.msra.mxu0 0.0
    %199 = vmatprep.subr.mxu0 0.0
    %200 = vmatpush1.msra.mxu0 0.0
    %201 = vmatprep.subr.mxu0 0.0
    %202 = vmatpush1.msra.mxu0 0.0
    %203 = vmatprep.subr.mxu0 0.0
    %204 = vmatpush1.msra.mxu0 0.0
    %205 = vmatprep.subr.mxu0 0.0
    %206 = vmatpush1.msra.mxu0 0.0
    %207 = vmatprep.subr.mxu0 0.0
    %208 = vmatpush1.msra.mxu0 0.0
    %209 = vmatprep.subr.mxu0 0.0
    %210 = vmatpush1.msra.mxu0 0.0
    %211 = vmatprep.subr.mxu0 0.0
    %212 = vmatpush1.msra.mxu0 0.0
    %213 = vmatprep.subr.mxu0 0.0
    %214 = vmatpush1.msra.mxu0 0.0
    %215 = vmatprep.subr.mxu0 0.0
    %216 = vmatpush1.msra.mxu0 0.0
    %217 = vmatprep.subr.mxu0 0.0
    %218 = vmatpush1.msra.mxu0 0.0
    %219 = vmatprep.mubr.f32.mxu0 0.0
    %220 = vmatmul.mubr.f32.gmra.mrb[0].mxu0 %v108
    %v221 = vpop.f32.mrb[0].mxu0
    %v222 = vadd.f32 %v89, %v221
    %v223 = vpop.f32.mrb[0].mxu0
    %v224 = vadd.f32 %v93, %v223
    %225 = vmatprep.mubr.f32.mxu0 0.0
    %226 = vmatmul.mubr.f32.gmra.mrb[0].mxu0 %v111
    %v227 = vpop.f32.mrb[0].mxu0
    %v228 = vadd.f32 %v89, %v227
    %v229 = vpop.f32.mrb[0].mxu0
    %v230 = vadd.f32 %v93, %v229
    %231 = vmatprep.mubr.f32.mxu0 0.0
    %232 = vmatmul.mubr.f32.gmra.mrb[0].mxu0 %v114
    %v233 = vpop.f32.mrb[0].mxu0
    %v234 = vadd.f32 %v89, %v233
    %v235 = vpop.f32.mrb[0].mxu0
    %v236 = vadd.f32 %v93, %v235
    %237 = vmatprep.mubr.f32.mxu0 0.0
    %238 = vmatmul.mubr.f32.gmra.mrb[0].mxu0 %v117
    %v239 = vpop.f32.mrb[0].mxu0
    %v240 = vadd.f32 %v89, %v239
    %v241 = vpop.f32.mrb[0].mxu0
    %v242 = vadd.f32 %v93, %v241
    %243 = vmatprep.mubr.f32.mxu0 0.0
    %244 = vmatmul.mubr.f32.gmra.mrb[0].mxu0 %v120
    %v245 = vpop.f32.mrb[0].mxu0
    %v246 = vadd.f32 %v89, %v245
    %v247 = vpop.f32.mrb[0].mxu0
    %v248 = vadd.f32 %v93, %v247
    %249 = vmatprep.mubr.f32.mxu0 0.0
    %250 = vmatmul.mubr.f32.gmra.mrb[0].mxu0 %v123
    %v251 = vpop.f32.mrb[0].mxu0
    %v252 = vadd.f32 %v89, %v251
    %v253 = vpop.f32.mrb[0].mxu0
    %v254 = vadd.f32 %v93, %v253
    %255 = vmatprep.mubr.f32.mxu0 0.0
    %256 = vmatmul.mubr.f32.gmra.mrb[0].mxu0 %v126
    %v257 = vpop.f32.mrb[0].mxu0
    %v258 = vadd.f32 %v89, %v257
    %v259 = vpop.f32.mrb[0].mxu0
    %v260 = vadd.f32 %v93, %v259
    %261 = vmatprep.mubr.f32.mxu0 0.0
    %262 = vmatmul.mubr.f32.gmra.mrb[0].mxu0 %v129
    %v263 = vpop.f32.mrb[0].mxu0
    %v264 = vadd.f32 %v89, %v263
    %v265 = vpop.f32.mrb[0].mxu0
    %v266 = vadd.f32 %v93, %v265
    %267 = vmatprep.mubr.f32.mxu0 0.0
    %268 = vmatmul.mubr.f32.gmra.mrb[0].mxu0 %v132
    %v269 = vpop.f32.mrb[0].mxu0
    %v270 = vadd.f32 %v89, %v269
    %v271 = vpop.f32.mrb[0].mxu0
    %v272 = vadd.f32 %v93, %v271
    %273 = vmatprep.mubr.f32.mxu0 0.0
    %274 = vmatmul.mubr.f32.gmra.mrb[0].mxu0 %v135
    %v275 = vpop.f32.mrb[0].mxu0
    %v276 = vadd.f32 %v89, %v275
    %v277 = vpop.f32.mrb[0].mxu0
    %v278 = vadd.f32 %v93, %v277
    %279 = vmatprep.mubr.f32.mxu0 0.0
    %280 = vmatmul.mubr.f32.gmra.mrb[0].mxu0 %v138
    %v281 = vpop.f32.mrb[0].mxu0
    %v282 = vadd.f32 %v89, %v281
    %v283 = vpop.f32.mrb[0].mxu0
    %v284 = vadd.f32 %v93, %v283
    %285 = vmatprep.mubr.f32.mxu0 0.0
    %286 = vmatmul.mubr.f32.gmra.mrb[0].mxu0 %v141
    %v287 = vpop.f32.mrb[0].mxu0
    %v288 = vadd.f32 %v89, %v287
    %v289 = vpop.f32.mrb[0].mxu0
    %v290 = vadd.f32 %v93, %v289
    %291 = vmatprep.mubr.f32.mxu0 0.0
    %292 = vmatmul.mubr.f32.gmra.mrb[0].mxu0 %v144
    %v293 = vpop.f32.mrb[0].mxu0
    %v294 = vadd.f32 %v89, %v293
    %v295 = vpop.f32.mrb[0].mxu0
    %v296 = vadd.f32 %v93, %v295
    %297 = vmatprep.mubr.f32.mxu0 0.0
    %298 = vmatmul.mubr.f32.gmra.mrb[0].mxu0 %v147
    %v299 = vpop.f32.mrb[0].mxu0
    %v300 = vadd.f32 %v89, %v299
    %v301 = vpop.f32.mrb[0].mxu0
    %v302 = vadd.f32 %v93, %v301
    %303 = vmatprep.mubr.f32.mxu0 0.0
    %304 = vmatmul.mubr.f32.gmra.mrb[0].mxu0 %v150
    %v305 = vpop.f32.mrb[0].mxu0
    %v306 = vadd.f32 %v89, %v305
    %v307 = vpop.f32.mrb[0].mxu0
    %v308 = vadd.f32 %v93, %v307
    %309 = vmatprep.mubr.f32.mxu0 0.0
    %310 = vmatmul.mubr.f32.gmra.mrb[0].mxu0 %v153
    %v311 = vpop.f32.mrb[0].mxu0
    %v312 = vadd.f32 %v89, %v311
    %v313 = vpop.f32.mrb[0].mxu0
    %v314 = vadd.f32 %v93, %v313
    %315 = vdwg.mxu0
    %316 = vmatprep.subr.mxu0 %v53
    %317 = vmatpush1.msra.mxu0 %v52
    %318 = vmatprep.subr.mxu0 %v57
    %319 = vmatpush1.msra.mxu0 %v56
    %320 = vmatprep.subr.mxu0 %v61
    %321 = vmatpush1.msra.mxu0 %v60
    %322 = vmatprep.subr.mxu0 %v65
    %323 = vmatpush1.msra.mxu0 %v64
    %324 = vmatprep.subr.mxu0 0.0
    %325 = vmatpush1.msra.mxu0 0.0
    %326 = vmatprep.subr.mxu0 0.0
    %327 = vmatpush1.msra.mxu0 0.0
    %328 = vmatprep.subr.mxu0 0.0
    %329 = vmatpush1.msra.mxu0 0.0
    %330 = vmatprep.subr.mxu0 0.0
    %331 = vmatpush1.msra.mxu0 0.0
    %332 = vmatprep.subr.mxu0 0.0
    %333 = vmatpush1.msra.mxu0 0.0
    %334 = vmatprep.subr.mxu0 0.0
    %335 = vmatpush1.msra.mxu0 0.0
    %336 = vmatprep.subr.mxu0 0.0
    %337 = vmatpush1.msra.mxu0 0.0
    %338 = vmatprep.subr.mxu0 0.0
    %339 = vmatpush1.msra.mxu0 0.0
    %340 = vmatprep.subr.mxu0 0.0
    %341 = vmatpush1.msra.mxu0 0.0
    %342 = vmatprep.subr.mxu0 0.0
    %343 = vmatpush1.msra.mxu0 0.0
    %344 = vmatprep.subr.mxu0 0.0
    %345 = vmatpush1.msra.mxu0 0.0
    %346 = vmatprep.subr.mxu0 0.0
    %347 = vmatpush1.msra.mxu0 0.0
    %348 = vmatprep.subr.mxu0 0.0
    %349 = vmatpush1.msra.mxu0 0.0
    %350 = vmatprep.subr.mxu0 0.0
    %351 = vmatpush1.msra.mxu0 0.0
    %352 = vmatprep.subr.mxu0 0.0
    %353 = vmatpush1.msra.mxu0 0.0
    %354 = vmatprep.subr.mxu0 0.0
    %355 = vmatpush1.msra.mxu0 0.0
    %356 = vmatprep.subr.mxu0 0.0
    %357 = vmatpush1.msra.mxu0 0.0
    %358 = vmatprep.subr.mxu0 0.0
    %359 = vmatpush1.msra.mxu0 0.0
    %360 = vmatprep.subr.mxu0 0.0
    %361 = vmatpush1.msra.mxu0 0.0
    %362 = vmatprep.subr.mxu0 0.0
    %363 = vmatpush1.msra.mxu0 0.0
    %364 = vmatprep.subr.mxu0 0.0
    %365 = vmatpush1.msra.mxu0 0.0
    %366 = vmatprep.subr.mxu0 0.0
    %367 = vmatpush1.msra.mxu0 0.0
    %368 = vmatprep.subr.mxu0 0.0
    %369 = vmatpush1.msra.mxu0 0.0
    %370 = vmatprep.subr.mxu0 0.0
    %371 = vmatpush1.msra.mxu0 0.0
    %372 = vmatprep.subr.mxu0 0.0
    %373 = vmatpush1.msra.mxu0 0.0
    %374 = vmatprep.subr.mxu0 0.0
    %375 = vmatpush1.msra.mxu0 0.0
    %376 = vmatprep.subr.mxu0 0.0
    %377 = vmatpush1.msra.mxu0 0.0
    %378 = vmatprep.subr.mxu0 0.0
    %379 = vmatpush1.msra.mxu0 0.0
    %380 = vmatprep.mubr.f32.mxu0 0.0
    %381 = vmatmul.mubr.f32.gmra.mrb[0].mxu0 %v108
    %v382 = vpop.f32.mrb[0].mxu0
    %v383 = vadd.f32 %v97, %v382
    %v384 = vpop.f32.mrb[0].mxu0
    %v385 = vadd.f32 %v101, %v384
    %386 = vmatprep.mubr.f32.mxu0 0.0
    %387 = vmatmul.mubr.f32.gmra.mrb[0].mxu0 %v111
    %v388 = vpop.f32.mrb[0].mxu0
    %v389 = vadd.f32 %v97, %v388
    %v390 = vpop.f32.mrb[0].mxu0
    %v391 = vadd.f32 %v101, %v390
    %392 = vmatprep.mubr.f32.mxu0 0.0
    %393 = vmatmul.mubr.f32.gmra.mrb[0].mxu0 %v114
    %v394 = vpop.f32.mrb[0].mxu0
    %v395 = vadd.f32 %v97, %v394
    %v396 = vpop.f32.mrb[0].mxu0
    %v397 = vadd.f32 %v101, %v396
    %398 = vmatprep.mubr.f32.mxu0 0.0
    %399 = vmatmul.mubr.f32.gmra.mrb[0].mxu0 %v117
    %v400 = vpop.f32.mrb[0].mxu0
    %v401 = vadd.f32 %v97, %v400
    %v402 = vpop.f32.mrb[0].mxu0
    %v403 = vadd.f32 %v101, %v402
    %404 = vmatprep.mubr.f32.mxu0 0.0
    %405 = vmatmul.mubr.f32.gmra.mrb[0].mxu0 %v120
    %v406 = vpop.f32.mrb[0].mxu0
    %v407 = vadd.f32 %v97, %v406
    %v408 = vpop.f32.mrb[0].mxu0
    %v409 = vadd.f32 %v101, %v408
    %410 = vmatprep.mubr.f32.mxu0 0.0
    %411 = vmatmul.mubr.f32.gmra.mrb[0].mxu0 %v123
    %v412 = vpop.f32.mrb[0].mxu0
    %v413 = vadd.f32 %v97, %v412
    %v414 = vpop.f32.mrb[0].mxu0
    %v415 = vadd.f32 %v101, %v414
    %416 = vmatprep.mubr.f32.mxu0 0.0
    %417 = vmatmul.mubr.f32.gmra.mrb[0].mxu0 %v126
    %v418 = vpop.f32.mrb[0].mxu0
    %v419 = vadd.f32 %v97, %v418
    %v420 = vpop.f32.mrb[0].mxu0
    %v421 = vadd.f32 %v101, %v420
    %422 = vmatprep.mubr.f32.mxu0 0.0
    %423 = vmatmul.mubr.f32.gmra.mrb[0].mxu0 %v129
    %v424 = vpop.f32.mrb[0].mxu0
    %v425 = vadd.f32 %v97, %v424
    %v426 = vpop.f32.mrb[0].mxu0
    %v427 = vadd.f32 %v101, %v426
    %428 = vmatprep.mubr.f32.mxu0 0.0
    %429 = vmatmul.mubr.f32.gmra.mrb[0].mxu0 %v132
    %v430 = vpop.f32.mrb[0].mxu0
    %v431 = vadd.f32 %v97, %v430
    %v432 = vpop.f32.mrb[0].mxu0
    %v433 = vadd.f32 %v101, %v432
    %434 = vmatprep.mubr.f32.mxu0 0.0
    %435 = vmatmul.mubr.f32.gmra.mrb[0].mxu0 %v135
    %v436 = vpop.f32.mrb[0].mxu0
    %v437 = vadd.f32 %v97, %v436
    %v438 = vpop.f32.mrb[0].mxu0
    %v439 = vadd.f32 %v101, %v438
    %440 = vmatprep.mubr.f32.mxu0 0.0
    %441 = vmatmul.mubr.f32.gmra.mrb[0].mxu0 %v138
    %v442 = vpop.f32.mrb[0].mxu0
    %v443 = vadd.f32 %v97, %v442
    %v444 = vpop.f32.mrb[0].mxu0
    %v445 = vadd.f32 %v101, %v444
    %446 = vmatprep.mubr.f32.mxu0 0.0
    %447 = vmatmul.mubr.f32.gmra.mrb[0].mxu0 %v141
    %v448 = vpop.f32.mrb[0].mxu0
    %v449 = vadd.f32 %v97, %v448
    %v450 = vpop.f32.mrb[0].mxu0
    %v451 = vadd.f32 %v101, %v450
    %452 = vmatprep.mubr.f32.mxu0 0.0
    %453 = vmatmul.mubr.f32.gmra.mrb[0].mxu0 %v144
    %v454 = vpop.f32.mrb[0].mxu0
    %v455 = vadd.f32 %v97, %v454
    %v456 = vpop.f32.mrb[0].mxu0
    %v457 = vadd.f32 %v101, %v456
    %458 = vmatprep.mubr.f32.mxu0 0.0
    %459 = vmatmul.mubr.f32.gmra.mrb[0].mxu0 %v147
    %v460 = vpop.f32.mrb[0].mxu0
    %v461 = vadd.f32 %v97, %v460
    %v462 = vpop.f32.mrb[0].mxu0
    %v463 = vadd.f32 %v101, %v462
    %464 = vmatprep.mubr.f32.mxu0 0.0
    %465 = vmatmul.mubr.f32.gmra.mrb[0].mxu0 %v150
    %v466 = vpop.f32.mrb[0].mxu0
    %v467 = vadd.f32 %v97, %v466
    %v468 = vpop.f32.mrb[0].mxu0
    %v469 = vadd.f32 %v101, %v468
    %470 = vmatprep.mubr.f32.mxu0 0.0
    %471 = vmatmul.mubr.f32.gmra.mrb[0].mxu0 %v153
    %v472 = vpop.f32.mrb[0].mxu0
    %v473 = vadd.f32 %v97, %v472
    %v474 = vpop.f32.mrb[0].mxu0
    %v475 = vadd.f32 %v101, %v474
    %476 = vdwg.mxu0
    %v477 = vtanh.pop %v222
    %v478 = vtanh.pop %v224
    %v479 = vtanh.pop %v383
    %v480 = vtanh.pop %v385
    %v481 = vtanh.pop %v228
    %v482 = vtanh.pop %v230
    %v483 = vtanh.pop %v389
    %v484 = vtanh.pop %v391
    %v485 = vtanh.pop %v234
    %v486 = vtanh.pop %v236
    %v487 = vtanh.pop %v395
    %v488 = vtanh.pop %v397
    %v489 = vtanh.pop %v240
    %v490 = vtanh.pop %v242
    %v491 = vtanh.pop %v401
    %v492 = vtanh.pop %v403
    %v493 = vtanh.pop %v246
    %v494 = vtanh.pop %v248
    %v495 = vtanh.pop %v407
    %v496 = vtanh.pop %v409
    %v497 = vtanh.pop %v252
    %v498 = vtanh.pop %v254
    %v499 = vtanh.pop %v413
    %v500 = vtanh.pop %v415
    %v501 = vtanh.pop %v258
    %v502 = vtanh.pop %v260
    %v503 = vtanh.pop %v419
    %v504 = vtanh.pop %v421
    %v505 = vtanh.pop %v264
    %v506 = vtanh.pop %v266
    %v507 = vtanh.pop %v425
    %v508 = vtanh.pop %v427
    %v509 = vtanh.pop %v270
    %v510 = vtanh.pop %v272
    %v511 = vtanh.pop %v431
    %v512 = vtanh.pop %v433
    %v513 = vtanh.pop %v276
    %v514 = vtanh.pop %v278
    %v515 = vtanh.pop %v437
    %v516 = vtanh.pop %v439
    %v517 = vtanh.pop %v282
    %v518 = vtanh.pop %v284
    %v519 = vtanh.pop %v443
    %v520 = vtanh.pop %v445
    %v521 = vtanh.pop %v288
    %v522 = vtanh.pop %v290
    %v523 = vtanh.pop %v449
    %v524 = vtanh.pop %v451
    %v525 = vtanh.pop %v294
    %v526 = vtanh.pop %v296
    %v527 = vtanh.pop %v455
    %v528 = vtanh.pop %v457
    %v529 = vtanh.pop %v300
    %v530 = vtanh.pop %v302
    %v531 = vtanh.pop %v461
    %v532 = vtanh.pop %v463
    %v533 = vtanh.pop %v306
    %v534 = vtanh.pop %v308
    %v535 = vtanh.pop %v467
    %v536 = vtanh.pop %v469
    %v537 = vtanh.pop %v312
    %v538 = vtanh.pop %v314
    %v539 = vtanh.pop %v473
    %v540 = vtanh.pop %v475
    %v541 = vstv %s68
    %v543 = vlaneseq
    %v544 = vshrl.u32 %v543, 7
    %v545 = vsub.s32 0, %v544
    %v546 = vrot.slane %v67, %v545
    %v547 = vlaneseq
    %v548 = vshrl.u32 %v547, 7
    %v549 = vsub.s32 1, %v548
    %v550 = vrot.slane %v67, %v549
    %v551 = vlaneseq
    %v552 = vshrl.u32 %v551, 7
    %v553 = vsub.s32 2, %v552
    %v554 = vrot.slane %v67, %v553
    %v555 = vlaneseq
    %v556 = vshrl.u32 %v555, 7
    %v557 = vsub.s32 3, %v556
    %v558 = vrot.slane %v67, %v557
    %563 = vmatprep.subr.mxu0 %v478
    %564 = vmatpush1.xpose.msra.mxu0 %v477
    %565 = vmatprep.subr.mxu0 %v482
    %566 = vmatpush1.xpose.msra.mxu0 %v481
    %567 = vmatprep.subr.mxu0 %v486
    %568 = vmatpush1.xpose.msra.mxu0 %v485
    %569 = vmatprep.subr.mxu0 %v490
    %570 = vmatpush1.xpose.msra.mxu0 %v489
    %571 = vmatprep.subr.mxu0 %v494
    %572 = vmatpush1.xpose.msra.mxu0 %v493
    %573 = vmatprep.subr.mxu0 %v498
    %574 = vmatpush1.xpose.msra.mxu0 %v497
    %575 = vmatprep.subr.mxu0 %v502
    %576 = vmatpush1.xpose.msra.mxu0 %v501
    %577 = vmatprep.subr.mxu0 %v506
    %578 = vmatpush1.xpose.msra.mxu0 %v505
    %579 = vmatprep.subr.mxu0 %v510
    %580 = vmatpush1.xpose.msra.mxu0 %v509
    %581 = vmatprep.subr.mxu0 %v514
    %582 = vmatpush1.xpose.msra.mxu0 %v513
    %583 = vmatprep.subr.mxu0 %v518
    %584 = vmatpush1.xpose.msra.mxu0 %v517
    %585 = vmatprep.subr.mxu0 %v522
    %586 = vmatpush1.xpose.msra.mxu0 %v521
    %587 = vmatprep.subr.mxu0 %v526
    %588 = vmatpush1.xpose.msra.mxu0 %v525
    %589 = vmatprep.subr.mxu0 %v530
    %590 = vmatpush1.xpose.msra.mxu0 %v529
    %591 = vmatprep.subr.mxu0 %v534
    %592 = vmatpush1.xpose.msra.mxu0 %v533
    %593 = vmatprep.subr.mxu0 %v538
    %594 = vmatpush1.xpose.msra.mxu0 %v537
    %595 = vmatprep.subr.mxu0 0.0
    %596 = vmatpush1.xpose.msra.mxu0 0.0
    %597 = vmatprep.subr.mxu0 0.0
    %598 = vmatpush1.xpose.msra.mxu0 0.0
    %599 = vmatprep.subr.mxu0 0.0
    %600 = vmatpush1.xpose.msra.mxu0 0.0
    %601 = vmatprep.subr.mxu0 0.0
    %602 = vmatpush1.xpose.msra.mxu0 0.0
    %603 = vmatprep.subr.mxu0 0.0
    %604 = vmatpush1.xpose.msra.mxu0 0.0
    %605 = vmatprep.subr.mxu0 0.0
    %606 = vmatpush1.xpose.msra.mxu0 0.0
    %607 = vmatprep.subr.mxu0 0.0
    %608 = vmatpush1.xpose.msra.mxu0 0.0
    %609 = vmatprep.subr.mxu0 0.0
    %610 = vmatpush1.xpose.msra.mxu0 0.0
    %611 = vmatprep.subr.mxu0 0.0
    %612 = vmatpush1.xpose.msra.mxu0 0.0
    %613 = vmatprep.subr.mxu0 0.0
    %614 = vmatpush1.xpose.msra.mxu0 0.0
    %615 = vmatprep.subr.mxu0 0.0
    %616 = vmatpush1.xpose.msra.mxu0 0.0
    %617 = vmatprep.subr.mxu0 0.0
    %618 = vmatpush1.xpose.msra.mxu0 0.0
    %619 = vmatprep.subr.mxu0 0.0
    %620 = vmatpush1.xpose.msra.mxu0 0.0
    %621 = vmatprep.subr.mxu0 0.0
    %622 = vmatpush1.xpose.msra.mxu0 0.0
    %623 = vmatprep.subr.mxu0 0.0
    %624 = vmatpush1.xpose.msra.mxu0 0.0
    %625 = vmatprep.subr.mxu0 0.0
    %626 = vmatpush1.xpose.msra.mxu0 0.0
    %627 = vmatprep.mubr.f32.mxu0 %v550
    %628 = vmatmul.mubr.f32.gmra.mrb[0].mxu0 %v546
    %v629 = vpop.f32.mrb[0].mxu0
    %v630 = vadd.f32 %v541, %v629
    %v631 = vpop.f32.mrb[0].mxu0
    %632 = vdwg.mxu0
    %633 = vmatprep.subr.mxu0 %v480
    %634 = vmatpush1.xpose.msra.mxu0 %v479
    %635 = vmatprep.subr.mxu0 %v484
    %636 = vmatpush1.xpose.msra.mxu0 %v483
    %637 = vmatprep.subr.mxu0 %v488
    %638 = vmatpush1.xpose.msra.mxu0 %v487
    %639 = vmatprep.subr.mxu0 %v492
    %640 = vmatpush1.xpose.msra.mxu0 %v491
    %641 = vmatprep.subr.mxu0 %v496
    %642 = vmatpush1.xpose.msra.mxu0 %v495
    %643 = vmatprep.subr.mxu0 %v500
    %644 = vmatpush1.xpose.msra.mxu0 %v499
    %645 = vmatprep.subr.mxu0 %v504
    %646 = vmatpush1.xpose.msra.mxu0 %v503
    %647 = vmatprep.subr.mxu0 %v508
    %648 = vmatpush1.xpose.msra.mxu0 %v507
    %649 = vmatprep.subr.mxu0 %v512
    %650 = vmatpush1.xpose.msra.mxu0 %v511
    %651 = vmatprep.subr.mxu0 %v516
    %652 = vmatpush1.xpose.msra.mxu0 %v515
    %653 = vmatprep.subr.mxu0 %v520
    %654 = vmatpush1.xpose.msra.mxu0 %v519
    %655 = vmatprep.subr.mxu0 %v524
    %656 = vmatpush1.xpose.msra.mxu0 %v523
    %657 = vmatprep.subr.mxu0 %v528
    %658 = vmatpush1.xpose.msra.mxu0 %v527
    %659 = vmatprep.subr.mxu0 %v532
    %660 = vmatpush1.xpose.msra.mxu0 %v531
    %661 = vmatprep.subr.mxu0 %v536
    %662 = vmatpush1.xpose.msra.mxu0 %v535
    %663 = vmatprep.subr.mxu0 %v540
    %664 = vmatpush1.xpose.msra.mxu0 %v539
    %665 = vmatprep.subr.mxu0 0.0
    %666 = vmatpush1.xpose.msra.mxu0 0.0
    %667 = vmatprep.subr.mxu0 0.0
    %668 = vmatpush1.xpose.msra.mxu0 0.0
    %669 = vmatprep.subr.mxu0 0.0
    %670 = vmatpush1.xpose.msra.mxu0 0.0
    %671 = vmatprep.subr.mxu0 0.0
    %672 = vmatpush1.xpose.msra.mxu0 0.0
    %673 = vmatprep.subr.mxu0 0.0
    %674 = vmatpush1.xpose.msra.mxu0 0.0
    %675 = vmatprep.subr.mxu0 0.0
    %676 = vmatpush1.xpose.msra.mxu0 0.0
    %677 = vmatprep.subr.mxu0 0.0
    %678 = vmatpush1.xpose.msra.mxu0 0.0
    %679 = vmatprep.subr.mxu0 0.0
    %680 = vmatpush1.xpose.msra.mxu0 0.0
    %681 = vmatprep.subr.mxu0 0.0
    %682 = vmatpush1.xpose.msra.mxu0 0.0
    %683 = vmatprep.subr.mxu0 0.0
    %684 = vmatpush1.xpose.msra.mxu0 0.0
    %685 = vmatprep.subr.mxu0 0.0
    %686 = vmatpush1.xpose.msra.mxu0 0.0
    %687 = vmatprep.subr.mxu0 0.0
    %688 = vmatpush1.xpose.msra.mxu0 0.0
    %689 = vmatprep.subr.mxu0 0.0
    %690 = vmatpush1.xpose.msra.mxu0 0.0
    %691 = vmatprep.subr.mxu0 0.0
    %692 = vmatpush1.xpose.msra.mxu0 0.0
    %693 = vmatprep.subr.mxu0 0.0
    %694 = vmatpush1.xpose.msra.mxu0 0.0
    %695 = vmatprep.subr.mxu0 0.0
    %696 = vmatpush1.xpose.msra.mxu0 0.0
    %697 = vmatprep.mubr.f32.mxu0 %v558
    %698 = vmatmul.mubr.f32.gmra.mrb[0].mxu0 %v554
    %v699 = vpop.f32.mrb[0].mxu0
    %v700 = vadd.f32 %v630, %v699
    %v701 = vpop.f32.mrb[0].mxu0
    %702 = vdwg.mxu0
    %703 = vst [vmem:[#allocation8] sm:$0x1] %v700
    // Predicated region
    $region30: #{tpu_custom_call.1} parent=1 // pred_check
      _
    $region31: #{tpu_custom_call.1} parent=1 // pred_check_branch
      %705 = sbr.rel (0) target = $region33
    $region32: #{tpu_custom_call.1} parent=1 // pred_region
      %s707 = ssub.s32 16, 16
      %708 = vsyncadd [#allocation5], %s707
      %s710 = sshll.u32 [#allocation8], 4
      %s711 = int_to_ptr.vmem [resolvable:$true] %s710
      %713 = dma.vmem_to_hbm [thread:$0]  %s711, 16, %s5, [#allocation5]
    $region33: #{tpu_custom_call.1} parent=1 // pred_fallthru
      _
    // Predicated region
    $region34: #{tpu_custom_call.1} parent=1 // pred_check
      _
    $region35: #{tpu_custom_call.1} parent=1 // pred_check_branch
      %715 = sbr.rel (0) target = $region37
    $region36: #{tpu_custom_call.1} parent=1 // pred_region
      %716 = dma.done [#allocation5], 16
    $region37: #{tpu_custom_call.1} parent=1 // pred_fallthru
      _
    %717 = vsyncpa [#allocation4], 1
    %718 = vsyncpa [#allocation7], 1
    %719 = vsyncpa [#allocation5], 1

</llo_original>
